<compile_context>
chip_gen: v7x
topology: tpu7x:2x2x1
jax: 0.10.0
libtpu: 0.0.40
codegen_flags: <defaults>
</compile_context>

<pallas_src>
import jax
import jax.numpy as jnp
from jax.experimental import pallas as pl
from jax.experimental.pallas import tpu as pltpu

NEG_SLOPE = 0.01  # F.leaky_relu default negative_slope
HIDDEN = 32


def _leaky_relu(x):
    return jnp.where(x > 0, x, NEG_SLOPE * x)


def _round_up(n, m):
    return ((n + m - 1) // m) * m


def valuenet_kernel(x_ref, w1_ref, w2_ref, w3_ref, bias_ref, o_ref):
    # (TILE_B, S) f32 streamed tile -> bf16 in-register for the single-pass
    # bf16 MXU path (accumulation stays f32 via preferred_element_type).
    x = x_ref[...].astype(jnp.bfloat16)

    b1 = bias_ref[:, 0:1]        # (H, 1) f32
    b2 = bias_ref[:, 1:2]        # (H, 1) f32
    b3 = bias_ref[0:1, 2:3]      # (1, 1) f32

    # fc1: W1 (H,S) . x^T -> (H, TILE_B). Batch lives in the lane dimension;
    # NT contraction (same pattern as attention q@k^T), no transpose of the
    # streamed x tile is materialized.
    h1 = jax.lax.dot_general(
        w1_ref[...], x,
        dimension_numbers=(((1,), (1,)), ((), ())),
        preferred_element_type=jnp.float32,
    ) + b1
    h1 = _leaky_relu(h1)                              # (H, TILE_B) f32

    # fc2: W2 (H,H) @ h1 (H, TILE_B) -> (H, TILE_B)
    h2 = jnp.dot(w2_ref[...], h1.astype(jnp.bfloat16),
                 preferred_element_type=jnp.float32) + b2
    h2 = _leaky_relu(h2)                              # (H, TILE_B) f32

    # fc3: W3 (1,H) @ h2 (H, TILE_B) -> (1, TILE_B); lane-dense output row.
    h3 = jnp.dot(w3_ref[...], h2.astype(jnp.bfloat16),
                 preferred_element_type=jnp.float32) + b3
    o_ref[...] = jax.nn.sigmoid(h3).astype(o_ref.dtype)


def value_net_forward(x, params, *, tile_b=8192):
    """x: (B, state_size) f32. params use PyTorch layout: W as (out, in), b as (out,)."""
    B, S = x.shape
    H = params["w1"].shape[0]

    # Resident parameters: weights in (out, in) layout, cast once to bf16.
    w1 = params["w1"].astype(jnp.bfloat16)                       # (H, S)
    w2 = params["w2"].astype(jnp.bfloat16)                       # (H, H)
    w3 = params["w3"].reshape(1, H).astype(jnp.bfloat16)         # (1, H)
    # Pack all biases into one small resident f32 block.
    b3_col = jnp.zeros((H,), jnp.float32).at[0].set(params["b3"].reshape(()))
    biases = jnp.stack(
        [params["b1"].reshape(H).astype(jnp.float32),
         params["b2"].reshape(H).astype(jnp.float32),
         b3_col], axis=1)                                        # (H, 3)

    # --- Batch tiling -----------------------------------------------------
    # Cap tile_b for v7x's smaller VMEM; the (tile_b, S) f32 x block is
    # lane-padded to 128 lanes -> ~tile_b*128*4 B per pipeline buffer (x2).
    tile_b = min(int(tile_b), 16384)
    b_pad128 = _round_up(B, 128)
    tile_b = max(128, min(_round_up(tile_b, 128), b_pad128))
    # v7x megacore: ensure >= 2 grid steps when the batch allows it.
    if b_pad128 <= tile_b and b_pad128 >= 256:
        tile_b = _round_up(b_pad128 // 2, 128)
    b_pad = _round_up(b_pad128, tile_b)
    num_tiles = b_pad // tile_b
    if b_pad != B:
        # Padded rows compute harmless values and are sliced off below.
        x = jnp.pad(x, ((0, b_pad - B), (0, 0)))

    flops = 2 * b_pad * (S * H + H * H + H)
    param_bytes = 2 * (H * S + H * H + H) + 4 * H * 3
    cost = pl.CostEstimate(
        flops=flops,
        transcendentals=2 * b_pad,                   # sigmoid = exp + reciprocal
        bytes_accessed=4 * b_pad * S + 4 * b_pad + param_bytes,
    )

    const = lambda i: (0, 0)                          # resident weights/biases
    out = pl.pallas_call(
        valuenet_kernel,
        out_shape=jax.ShapeDtypeStruct((1, b_pad), jnp.float32),
        grid=(num_tiles,),
        in_specs=[
            pl.BlockSpec((tile_b, S), lambda i: (i, 0)),   # streamed activations
            pl.BlockSpec((H, S), const),                   # w1 (bf16, resident)
            pl.BlockSpec((H, H), const),                   # w2 (bf16, resident)
            pl.BlockSpec((1, H), const),                   # w3 (bf16, resident)
            pl.BlockSpec((H, 3), const),                   # packed biases (f32)
        ],
        out_specs=pl.BlockSpec((1, tile_b), lambda i: (0, i)),  # lane-dense row
        compiler_params=pltpu.CompilerParams(
            dimension_semantics=("parallel",),        # megacore split on v7x
        ),
        cost_estimate=cost,
    )(x, w1, w2, w3, biases)

    # (1, b_pad) row-major == batch order; reshape to column, drop padding.
    return out.reshape(b_pad, 1)[:B]


def init_params(key, state_size, hidden_size=HIDDEN):
    """Deterministic init mimicking PyTorch nn.Linear default U[-1/sqrt(fan_in), +],
    stored in PyTorch (out, in) layout."""
    ks = jax.random.split(key, 6)

    def linear(kw, kb, fan_in, fan_out):
        bound = 1.0 / jnp.sqrt(fan_in)
        w = jax.random.uniform(kw, (fan_out, fan_in), jnp.float32, -bound, bound)
        b = jax.random.uniform(kb, (fan_out,), jnp.float32, -bound, bound)
        return w, b

    w1, b1 = linear(ks[0], ks[1], state_size, hidden_size)
    w2, b2 = linear(ks[2], ks[3], hidden_size, hidden_size)
    w3, b3 = linear(ks[4], ks[5], hidden_size, 1)
    return {"w1": w1, "b1": b1, "w2": w2, "b2": b2, "w3": w3, "b3": b3}


def reference_forward(x, p):
    h1 = _leaky_relu(x @ p["w1"].T + p["b1"])
    h2 = _leaky_relu(h1 @ p["w2"].T + p["b2"])
    return jax.nn.sigmoid(h2 @ p["w3"].T + p["b3"])


if __name__ == "__main__":
    key = jax.random.PRNGKey(0)
    k_param, k_x = jax.random.split(key)

    batch = 8
    state_size = 16
    hidden_size = 32

    params = init_params(k_param, state_size, hidden_size)
    x = jax.random.normal(k_x, (batch, state_size), jnp.float32)

    out = jax.block_until_ready(value_net_forward(x, params))
    ref = reference_forward(x, params)

    assert out.shape == (batch, 1), out.shape
    # bf16 MXU inputs (f32 accumulation): relaxed tolerance vs the f32 reference.
    assert jnp.allclose(out, ref, atol=2e-2, rtol=2e-2), (out, ref)

    print("KERNEL_OK")
</pallas_src>

<mosaic_0001>
module attributes {stable_mosaic.version = 11 : i64} {
  func.func @valuenet_kernel(%arg0: i32, %arg1: memref<128x16xf32, #tpu.memory_space<vmem>>, %arg2: memref<32x16xbf16, #tpu.memory_space<vmem>>, %arg3: memref<32x32xbf16, #tpu.memory_space<vmem>>, %arg4: memref<1x32xbf16, #tpu.memory_space<vmem>>, %arg5: memref<32x3xf32, #tpu.memory_space<vmem>>, %arg6: memref<1x128xf32, #tpu.memory_space<vmem>>) attributes {dimension_semantics = [#tpu.dimension_semantics<parallel>], iteration_bounds = array<i64: 1>, scalar_prefetch = 0 : i64, scratch_operands = 0 : i64, tpu.core_type = #tpu.core_type<tc>, window_params = [{transform_indices = @transform_0, window_bounds = array<i64: 128, 16>}, {pipeline_mode = #tpu.pipeline_mode<synchronous>, transform_indices = @transform_1, window_bounds = array<i64: 32, 16>}, {pipeline_mode = #tpu.pipeline_mode<synchronous>, transform_indices = @transform_2, window_bounds = array<i64: 32, 32>}, {pipeline_mode = #tpu.pipeline_mode<synchronous>, transform_indices = @transform_3, window_bounds = array<i64: 1, 32>}, {pipeline_mode = #tpu.pipeline_mode<synchronous>, transform_indices = @transform_4, window_bounds = array<i64: 32, 3>}, {transform_indices = @transform_5, window_bounds = array<i64: 1, 128>}]} {
    %c0 = arith.constant 0 : index
    %c0_0 = arith.constant 0 : index
    %0 = vector.load %arg1[%c0, %c0_0] : memref<128x16xf32, #tpu.memory_space<vmem>>, vector<128x16xf32>
    %1 = arith.truncf %0 : vector<128x16xf32> to vector<128x16xbf16>
    %c0_1 = arith.constant 0 : index
    %c0_2 = arith.constant 0 : index
    %2 = vector.load %arg5[%c0_1, %c0_2] : memref<32x3xf32, #tpu.memory_space<vmem>>, vector<32x1xf32>
    %c0_3 = arith.constant 0 : index
    %c1 = arith.constant 1 : index
    %3 = vector.load %arg5[%c0_3, %c1] : memref<32x3xf32, #tpu.memory_space<vmem>>, vector<32x1xf32>
    %c0_4 = arith.constant 0 : index
    %c2 = arith.constant 2 : index
    %4 = vector.load %arg5[%c0_4, %c2] : memref<32x3xf32, #tpu.memory_space<vmem>>, vector<1x1xf32>
    %c0_5 = arith.constant 0 : index
    %c0_6 = arith.constant 0 : index
    %5 = vector.load %arg2[%c0_5, %c0_6] : memref<32x16xbf16, #tpu.memory_space<vmem>>, vector<32x16xbf16>
    %cst = arith.constant dense<0.000000e+00> : vector<32x128xf32>
    %6 = tpu.matmul %5, %1, %cst {dimension_numbers = #tpu.dot_dimension_numbers<[1], [1], [0], [0], [0, 0, 1, 0], [], []>} : vector<32x16xbf16>, vector<128x16xbf16>, vector<32x128xf32> -> vector<32x128xf32>
    %7 = vector.broadcast %2 : vector<32x1xf32> to vector<32x128xf32>
    %8 = arith.addf %6, %7 : vector<32x128xf32>
    %cst_7 = arith.constant 0.000000e+00 : f32
    %9 = vector.broadcast %cst_7 : f32 to vector<32x128xf32>
    %10 = arith.cmpf ogt, %8, %9 : vector<32x128xf32>
    %cst_8 = arith.constant 0.00999999977 : f32
    %11 = vector.broadcast %cst_8 : f32 to vector<32x128xf32>
    %12 = arith.mulf %11, %8 : vector<32x128xf32>
    %13 = arith.select %10, %8, %12 : vector<32x128xi1>, vector<32x128xf32>
    %c0_9 = arith.constant 0 : index
    %c0_10 = arith.constant 0 : index
    %14 = vector.load %arg3[%c0_9, %c0_10] : memref<32x32xbf16, #tpu.memory_space<vmem>>, vector<32x32xbf16>
    %15 = arith.truncf %13 : vector<32x128xf32> to vector<32x128xbf16>
    %cst_11 = arith.constant dense<0.000000e+00> : vector<32x128xf32>
    %16 = tpu.matmul %14, %15, %cst_11 {dimension_numbers = #tpu.dot_dimension_numbers<[1], [0], [0], [1], [0, 0, 1, 1], [], []>} : vector<32x32xbf16>, vector<32x128xbf16>, vector<32x128xf32> -> vector<32x128xf32>
    %17 = vector.broadcast %3 : vector<32x1xf32> to vector<32x128xf32>
    %18 = arith.addf %16, %17 : vector<32x128xf32>
    %cst_12 = arith.constant 0.000000e+00 : f32
    %19 = vector.broadcast %cst_12 : f32 to vector<32x128xf32>
    %20 = arith.cmpf ogt, %18, %19 : vector<32x128xf32>
    %cst_13 = arith.constant 0.00999999977 : f32
    %21 = vector.broadcast %cst_13 : f32 to vector<32x128xf32>
    %22 = arith.mulf %21, %18 : vector<32x128xf32>
    %23 = arith.select %20, %18, %22 : vector<32x128xi1>, vector<32x128xf32>
    %c0_14 = arith.constant 0 : index
    %c0_15 = arith.constant 0 : index
    %24 = vector.load %arg4[%c0_14, %c0_15] : memref<1x32xbf16, #tpu.memory_space<vmem>>, vector<1x32xbf16>
    %25 = arith.truncf %23 : vector<32x128xf32> to vector<32x128xbf16>
    %cst_16 = arith.constant dense<0.000000e+00> : vector<1x128xf32>
    %26 = tpu.matmul %24, %25, %cst_16 {dimension_numbers = #tpu.dot_dimension_numbers<[1], [0], [0], [1], [0, 0, 1, 1], [], []>} : vector<1x32xbf16>, vector<32x128xbf16>, vector<1x128xf32> -> vector<1x128xf32>
    %27 = vector.broadcast %4 : vector<1x1xf32> to vector<1x128xf32>
    %28 = arith.addf %26, %27 : vector<1x128xf32>
    %29 = arith.negf %28 : vector<1x128xf32>
    %30 = math.exp %29 : vector<1x128xf32>
    %cst_17 = arith.constant 1.000000e+00 : f32
    %31 = vector.broadcast %cst_17 : f32 to vector<1x128xf32>
    %32 = arith.addf %31, %30 : vector<1x128xf32>
    %33 = arith.divf %31, %32 : vector<1x128xf32>
    %c0_18 = arith.constant 0 : index
    %c0_19 = arith.constant 0 : index
    %34 = vector.load %arg6[%c0_18, %c0_19] : memref<1x128xf32, #tpu.memory_space<vmem>>, vector<1x128xf32>
    tpu.vector_store %arg6[%c0_18, %c0_19], %33 {strides = array<i32>} : memref<1x128xf32, #tpu.memory_space<vmem>>, vector<1x128xf32>,
    return
  }
  func.func @transform_0(%arg0: i32) -> (i32, i32) {
    %c0_i32 = arith.constant 0 : i32
    %c0_i32_0 = arith.constant 0 : i32
    return %arg0, %c0_i32 : i32, i32
  }
  func.func @transform_1(%arg0: i32) -> (i32, i32) {
    %c0_i32 = arith.constant 0 : i32
    %c0_i32_0 = arith.constant 0 : i32
    %c0_i32_1 = arith.constant 0 : i32
    return %c0_i32, %c0_i32_0 : i32, i32
  }
  func.func @transform_2(%arg0: i32) -> (i32, i32) {
    %c0_i32 = arith.constant 0 : i32
    %c0_i32_0 = arith.constant 0 : i32
    %c0_i32_1 = arith.constant 0 : i32
    return %c0_i32, %c0_i32_0 : i32, i32
  }
  func.func @transform_3(%arg0: i32) -> (i32, i32) {
    %c0_i32 = arith.constant 0 : i32
    %c0_i32_0 = arith.constant 0 : i32
    %c0_i32_1 = arith.constant 0 : i32
    return %c0_i32, %c0_i32_0 : i32, i32
  }
  func.func @transform_4(%arg0: i32) -> (i32, i32) {
    %c0_i32 = arith.constant 0 : i32
    %c0_i32_0 = arith.constant 0 : i32
    %c0_i32_1 = arith.constant 0 : i32
    return %c0_i32, %c0_i32_0 : i32, i32
  }
  func.func @transform_5(%arg0: i32) -> (i32, i32) {
    %c0_i32 = arith.constant 0 : i32
    %c0_i32_0 = arith.constant 0 : i32
    return %c0_i32, %arg0 : i32, i32
  }
}

</mosaic_0001>

<llo_original>
// kernel: tpu_custom_call.1
$region0: #{tpu_custom_call.1}
  #allocation0 [shape = 'u32[]', space=smem, size = 0x4, offset = 0x4, fixed_abs, tag = 'smem constant byte address 0x4 - core index']
  #allocation1 [shape = 'u32[144,128]{1,0:T(1,128)}', space=vmem, size = 0x12000, scoped, tag = 'internal scratch']
  %s0 = inlined_call_operand.vmem [shape: f32[128,16], index: 0, kind: input, shape index: {}]
  %s1 = inlined_call_operand.vmem [shape: bf16[32,16], index: 1, kind: input, shape index: {}]
  %s2 = inlined_call_operand.vmem [shape: bf16[32,32], index: 2, kind: input, shape index: {}]
  %s3 = inlined_call_operand.vmem [shape: bf16[1,32], index: 3, kind: input, shape index: {}]
  %s4 = inlined_call_operand.vmem [shape: f32[32,3], index: 4, kind: input, shape index: {}]
  %s5 = inlined_call_operand.hbm [shape: f32[1,128], index: 5, kind: output, shape index: {}]
  %s6 = sld [smem:[#allocation0]]
  $region30: #{tpu_custom_call.1} parent=0
    _
  %s8 = ssub.s32 1, %s6
  %s9 = scalar_select 0, %s8, %s6
  $region1: #{tpu_custom_call.1} parent=0
    #allocation2 [shape = 'u8[512]{0}', space=vmem, size = 0x400, scoped, tag = 'output window, operand 0, single buffered']
    #allocation3 [shape = 's32[1]{0}', space=sflag, size = 0x4, scoped, tag = 'scoped memory for tpu_custom_call.1']
    %10 = vsyncpa [#allocation3], 0
    // Predicated region
    $region2: #{tpu_custom_call.1} parent=1 // pred_check
      _
    $region3: #{tpu_custom_call.1} parent=1 // pred_check_branch
      %12 = sbr.rel (0) target = $region5
    $region4: #{tpu_custom_call.1} parent=1 // pred_region
      _
    $region5: #{tpu_custom_call.1} parent=1 // pred_fallthru
      _
    // Predicated region
    $region6: #{tpu_custom_call.1} parent=1 // pred_check
      _
    $region7: #{tpu_custom_call.1} parent=1 // pred_check_branch
      %14 = sbr.rel (0) target = $region9
    $region8: #{tpu_custom_call.1} parent=1 // pred_region
      _
    $region9: #{tpu_custom_call.1} parent=1 // pred_fallthru
      _
    // Predicated region
    $region10: #{tpu_custom_call.1} parent=1 // pred_check
      _
    $region11: #{tpu_custom_call.1} parent=1 // pred_check_branch
      %16 = sbr.rel (0) target = $region13
    $region12: #{tpu_custom_call.1} parent=1 // pred_region
      _
    $region13: #{tpu_custom_call.1} parent=1 // pred_fallthru
      _
    // Predicated region
    $region14: #{tpu_custom_call.1} parent=1 // pred_check
      _
    $region15: #{tpu_custom_call.1} parent=1 // pred_check_branch
      %18 = sbr.rel (0) target = $region17
    $region16: #{tpu_custom_call.1} parent=1 // pred_region
      _
    $region17: #{tpu_custom_call.1} parent=1 // pred_fallthru
      _
    // Predicated region
    $region18: #{tpu_custom_call.1} parent=1 // pred_check
      _
    $region19: #{tpu_custom_call.1} parent=1 // pred_check_branch
      %20 = sbr.rel (0) target = $region21
    $region20: #{tpu_custom_call.1} parent=1 // pred_region
      _
    $region21: #{tpu_custom_call.1} parent=1 // pred_fallthru
      _
    %v22 = vld [vmem:[%s0] sm:$0xff]
    %v23 = vld [vmem:[%s0 + $0x8] sm:$0xff]
    %v24 = vld [vmem:[%s0 + $0x10] sm:$0xff]
    %v25 = vld [vmem:[%s0 + $0x18] sm:$0xff]
    %v26 = vld [vmem:[%s0 + $0x20] sm:$0xff]
    %v27 = vld [vmem:[%s0 + $0x28] sm:$0xff]
    %v28 = vld [vmem:[%s0 + $0x30] sm:$0xff]
    %v29 = vld [vmem:[%s0 + $0x38] sm:$0xff]
    %v30 = vld [vmem:[%s0 + $0x40] sm:$0xff]
    %v31 = vld [vmem:[%s0 + $0x48] sm:$0xff]
    %v32 = vld [vmem:[%s0 + $0x50] sm:$0xff]
    %v33 = vld [vmem:[%s0 + $0x58] sm:$0xff]
    %v34 = vld [vmem:[%s0 + $0x60] sm:$0xff]
    %v35 = vld [vmem:[%s0 + $0x68] sm:$0xff]
    %v36 = vld [vmem:[%s0 + $0x70] sm:$0xff]
    %v37 = vld [vmem:[%s0 + $0x78] sm:$0xff]
    %v38 = vpack.c.bf16 %v23, %v22
    %v39 = vpack.c.bf16 %v25, %v24
    %v40 = vpack.c.bf16 %v27, %v26
    %v41 = vpack.c.bf16 %v29, %v28
    %v42 = vpack.c.bf16 %v31, %v30
    %v43 = vpack.c.bf16 %v33, %v32
    %v44 = vpack.c.bf16 %v35, %v34
    %v45 = vpack.c.bf16 %v37, %v36
    %v46 = vld [vmem:[%s4] sm:$0xff]
    %v47 = vld [vmem:[%s4 + $0x8] sm:$0xff]
    %v48 = vld [vmem:[%s4 + $0x10] sm:$0xff]
    %v49 = vld [vmem:[%s4 + $0x18] sm:$0xff]
    %v50 = vld [vmem:[%s4] sm:$0x1]
    %v51 = vld [vmem:[%s1] sm:$0xf]
    %v52 = vld [vmem:[%s1 + $0x4] sm:$0xf]
    %v53 = vld [vmem:[%s1 + $0x8] sm:$0xf]
    %v54 = vld [vmem:[%s1 + $0xc] sm:$0xf]
    %56 = vset.pattern.permute.xlu0 0
    %57 = vperm.xlu0 %56, %v46
    %v58 = vpop.permute.xlu0 %57
    %61 = vset.pattern.permute.xlu0 0
    %62 = vperm.xlu0 %61, %v47
    %v63 = vpop.permute.xlu0 %62
    %66 = vset.pattern.permute.xlu0 0
    %67 = vperm.xlu0 %66, %v48
    %v68 = vpop.permute.xlu0 %67
    %71 = vset.pattern.permute.xlu0 0
    %72 = vperm.xlu0 %71, %v49
    %v73 = vpop.permute.xlu0 %72
    %v79 = vunpack.c.l.b16 %v51
    %v80 = vunpack.c.l.b16 %v52
    %v81 = vunpack.c.l.b16 %v53
    %v82 = vunpack.c.l.b16 %v54
    %v83 = vpack.c.b16 %v80, %v79
    %v84 = vpack.c.b16 %v82, %v81
    %vm85 = vcmask 130048
    %v87 = vsel %vm85, %v83, 0
    %v90 = vsel %vm85, %v84, 0
    %v93 = vsel %vm85, %v38, 0
    %v96 = vsel %vm85, %v39, 0
    %v99 = vsel %vm85, %v40, 0
    %v102 = vsel %vm85, %v41, 0
    %v105 = vsel %vm85, %v42, 0
    %v108 = vsel %vm85, %v43, 0
    %v111 = vsel %vm85, %v44, 0
    %v114 = vsel %vm85, %v45, 0
    %116 = vmatprep.subr.bf16.mxu0 0
    %117 = vmatpush1.bf16.xpose.msra.mxu0 %v93
    %118 = vmatprep.subr.bf16.mxu0 0
    %119 = vmatpush1.bf16.xpose.msra.mxu0 %v96
    %120 = vmatprep.subr.bf16.mxu0 0
    %121 = vmatpush1.bf16.xpose.msra.mxu0 %v99
    %122 = vmatprep.subr.bf16.mxu0 0
    %123 = vmatpush1.bf16.xpose.msra.mxu0 %v102
    %124 = vmatprep.subr.bf16.mxu0 0
    %125 = vmatpush1.bf16.xpose.msra.mxu0 %v105
    %126 = vmatprep.subr.bf16.mxu0 0
    %127 = vmatpush1.bf16.xpose.msra.mxu0 %v108
    %128 = vmatprep.subr.bf16.mxu0 0
    %129 = vmatpush1.bf16.xpose.msra.mxu0 %v111
    %130 = vmatprep.subr.bf16.mxu0 0
    %131 = vmatpush1.bf16.xpose.msra.mxu0 %v114
    %132 = vmatprep.subr.bf16.mxu0 0
    %133 = vmatpush1.bf16.xpose.msra.mxu0 0
    %134 = vmatprep.subr.bf16.mxu0 0
    %135 = vmatpush1.bf16.xpose.msra.mxu0 0
    %136 = vmatprep.subr.bf16.mxu0 0
    %137 = vmatpush1.bf16.xpose.msra.mxu0 0
    %138 = vmatprep.subr.bf16.mxu0 0
    %139 = vmatpush1.bf16.xpose.msra.mxu0 0
    %140 = vmatprep.subr.bf16.mxu0 0
    %141 = vmatpush1.bf16.xpose.msra.mxu0 0
    %142 = vmatprep.subr.bf16.mxu0 0
    %143 = vmatpush1.bf16.xpose.msra.mxu0 0
    %144 = vmatprep.subr.bf16.mxu0 0
    %145 = vmatpush1.bf16.xpose.msra.mxu0 0
    %146 = vmatprep.subr.bf16.mxu0 0
    %147 = vmatpush1.bf16.xpose.msra.mxu0 0
    %148 = vmatprep.mubr.bf16.mxu0 0
    %149 = vmatmul.mubr.bf16.gmra.mrb[0].mxu0 %v87
    %v150 = vpop.f32.mrb[0].mxu0
    %v151 = vadd.f32 %v58, %v150
    %v152 = vpop.f32.mrb[0].mxu0
    %v153 = vpop.f32.mrb[0].mxu0
    %v154 = vadd.f32 %v63, %v153
    %v155 = vpop.f32.mrb[0].mxu0
    %156 = vmatprep.mubr.bf16.mxu0 0
    %157 = vmatmul.mubr.bf16.gmra.mrb[0].mxu0 %v90
    %v158 = vpop.f32.mrb[0].mxu0
    %v159 = vadd.f32 %v68, %v158
    %v160 = vpop.f32.mrb[0].mxu0
    %v161 = vpop.f32.mrb[0].mxu0
    %v162 = vadd.f32 %v73, %v161
    %v163 = vpop.f32.mrb[0].mxu0
    %164 = vdwg.mxu0
    %vm165 = vcmp.gt.f32.partialorder %v151, 0.0
    %vm166 = vcmp.gt.f32.partialorder %v154, 0.0
    %vm167 = vcmp.gt.f32.partialorder %v159, 0.0
    %vm168 = vcmp.gt.f32.partialorder %v162, 0.0
    %v169 = vmul.f32 %v151, 0.01
    %v170 = vmul.f32 %v154, 0.01
    %v171 = vmul.f32 %v159, 0.01
    %v172 = vmul.f32 %v162, 0.01
    %v173 = vsel %vm165, %v151, %v169
    %v174 = vsel %vm166, %v154, %v170
    %v175 = vsel %vm167, %v159, %v171
    %v176 = vsel %vm168, %v162, %v172
    %v177 = vld [vmem:[%s2] sm:$0xf]
    %v178 = vld [vmem:[%s2 + $0x4] sm:$0xf]
    %v179 = vld [vmem:[%s2 + $0x8] sm:$0xf]
    %v180 = vld [vmem:[%s2 + $0xc] sm:$0xf]
    %v181 = vpack.c.bf16 %v174, %v173
    %v182 = vpack.c.bf16 %v176, %v175
    %183 = vset.pattern.permute.xlu0 1
    %184 = vperm.xlu0 %183, %v46
    %v185 = vpop.permute.xlu0 %184
    %187 = vset.pattern.permute.xlu0 1
    %188 = vperm.xlu0 %187, %v47
    %v189 = vpop.permute.xlu0 %188
    %191 = vset.pattern.permute.xlu0 1
    %192 = vperm.xlu0 %191, %v48
    %v193 = vpop.permute.xlu0 %192
    %195 = vset.pattern.permute.xlu0 1
    %196 = vperm.xlu0 %195, %v49
    %v197 = vpop.permute.xlu0 %196
    %v203 = vunpack.c.l.b16 %v177
    %v204 = vunpack.c.l.b16 %v178
    %v205 = vunpack.c.l.b16 %v179
    %v206 = vunpack.c.l.b16 %v180
    %v207 = vpack.c.b16 %v204, %v203
    %v208 = vpack.c.b16 %v206, %v205
    %vm209 = vcmask 261120
    %v211 = vsel %vm209, %v207, 0
    %v214 = vsel %vm209, %v208, 0
    %216 = vmatprep.subr.bf16.mxu0 0
    %217 = vmatpush1.bf16.msra.mxu0 %v181
    %218 = vmatprep.subr.bf16.mxu0 0
    %219 = vmatpush1.bf16.msra.mxu0 %v182
    %220 = vmatprep.subr.bf16.mxu0 0
    %221 = vmatpush1.bf16.msra.mxu0 0
    %222 = vmatprep.subr.bf16.mxu0 0
    %223 = vmatpush1.bf16.msra.mxu0 0
    %224 = vmatprep.subr.bf16.mxu0 0
    %225 = vmatpush1.bf16.msra.mxu0 0
    %226 = vmatprep.subr.bf16.mxu0 0
    %227 = vmatpush1.bf16.msra.mxu0 0
    %228 = vmatprep.subr.bf16.mxu0 0
    %229 = vmatpush1.bf16.msra.mxu0 0
    %230 = vmatprep.subr.bf16.mxu0 0
    %231 = vmatpush1.bf16.msra.mxu0 0
    %232 = vmatprep.subr.bf16.mxu0 0
    %233 = vmatpush1.bf16.msra.mxu0 0
    %234 = vmatprep.subr.bf16.mxu0 0
    %235 = vmatpush1.bf16.msra.mxu0 0
    %236 = vmatprep.subr.bf16.mxu0 0
    %237 = vmatpush1.bf16.msra.mxu0 0
    %238 = vmatprep.subr.bf16.mxu0 0
    %239 = vmatpush1.bf16.msra.mxu0 0
    %240 = vmatprep.subr.bf16.mxu0 0
    %241 = vmatpush1.bf16.msra.mxu0 0
    %242 = vmatprep.subr.bf16.mxu0 0
    %243 = vmatpush1.bf16.msra.mxu0 0
    %244 = vmatprep.subr.bf16.mxu0 0
    %245 = vmatpush1.bf16.msra.mxu0 0
    %246 = vmatprep.subr.bf16.mxu0 0
    %247 = vmatpush1.bf16.msra.mxu0 0
    %248 = vmatprep.mubr.bf16.mxu0 0
    %249 = vmatmul.mubr.bf16.gmra.mrb[0].mxu0 %v211
    %v250 = vpop.f32.mrb[0].mxu0
    %v251 = vadd.f32 %v185, %v250
    %v252 = vpop.f32.mrb[0].mxu0
    %v253 = vpop.f32.mrb[0].mxu0
    %v254 = vadd.f32 %v189, %v253
    %v255 = vpop.f32.mrb[0].mxu0
    %256 = vmatprep.mubr.bf16.mxu0 0
    %257 = vmatmul.mubr.bf16.gmra.mrb[0].mxu0 %v214
    %v258 = vpop.f32.mrb[0].mxu0
    %v259 = vadd.f32 %v193, %v258
    %v260 = vpop.f32.mrb[0].mxu0
    %v261 = vpop.f32.mrb[0].mxu0
    %v262 = vadd.f32 %v197, %v261
    %v263 = vpop.f32.mrb[0].mxu0
    %264 = vdwg.mxu0
    %vm265 = vcmp.gt.f32.partialorder %v251, 0.0
    %vm266 = vcmp.gt.f32.partialorder %v254, 0.0
    %vm267 = vcmp.gt.f32.partialorder %v259, 0.0
    %vm268 = vcmp.gt.f32.partialorder %v262, 0.0
    %v269 = vmul.f32 %v251, 0.01
    %v270 = vmul.f32 %v254, 0.01
    %v271 = vmul.f32 %v259, 0.01
    %v272 = vmul.f32 %v262, 0.01
    %v273 = vsel %vm265, %v251, %v269
    %v274 = vsel %vm266, %v254, %v270
    %v275 = vsel %vm267, %v259, %v271
    %v276 = vsel %vm268, %v262, %v272
    %v277 = vld [vmem:[%s3] sm:$0x1]
    %v278 = vpack.c.bf16 %v274, %v273
    %v279 = vpack.c.bf16 %v276, %v275
    %281 = vset.pattern.permute.xlu0 2
    %282 = vperm.xlu0 %281, %v50
    %v283 = vpop.permute.xlu0 %282
    %v286 = vsel %vm209, %v277, 0
    %288 = vmatprep.subr.bf16.mxu0 0
    %289 = vmatpush1.bf16.msra.mxu0 %v278
    %290 = vmatprep.subr.bf16.mxu0 0
    %291 = vmatpush1.bf16.msra.mxu0 %v279
    %292 = vmatprep.subr.bf16.mxu0 0
    %293 = vmatpush1.bf16.msra.mxu0 0
    %294 = vmatprep.subr.bf16.mxu0 0
    %295 = vmatpush1.bf16.msra.mxu0 0
    %296 = vmatprep.subr.bf16.mxu0 0
    %297 = vmatpush1.bf16.msra.mxu0 0
    %298 = vmatprep.subr.bf16.mxu0 0
    %299 = vmatpush1.bf16.msra.mxu0 0
    %300 = vmatprep.subr.bf16.mxu0 0
    %301 = vmatpush1.bf16.msra.mxu0 0
    %302 = vmatprep.subr.bf16.mxu0 0
    %303 = vmatpush1.bf16.msra.mxu0 0
    %304 = vmatprep.subr.bf16.mxu0 0
    %305 = vmatpush1.bf16.msra.mxu0 0
    %306 = vmatprep.subr.bf16.mxu0 0
    %307 = vmatpush1.bf16.msra.mxu0 0
    %308 = vmatprep.subr.bf16.mxu0 0
    %309 = vmatpush1.bf16.msra.mxu0 0
    %310 = vmatprep.subr.bf16.mxu0 0
    %311 = vmatpush1.bf16.msra.mxu0 0
    %312 = vmatprep.subr.bf16.mxu0 0
    %313 = vmatpush1.bf16.msra.mxu0 0
    %314 = vmatprep.subr.bf16.mxu0 0
    %315 = vmatpush1.bf16.msra.mxu0 0
    %316 = vmatprep.subr.bf16.mxu0 0
    %317 = vmatpush1.bf16.msra.mxu0 0
    %318 = vmatprep.subr.bf16.mxu0 0
    %319 = vmatpush1.bf16.msra.mxu0 0
    %320 = vmatprep.mubr.bf16.mxu0 0
    %321 = vmatmul.mubr.bf16.gmra.mrb[0].mxu0 %v286
    %v322 = vpop.f32.mrb[0].mxu0
    %v323 = vadd.f32 %v283, %v322
    %v324 = vpop.f32.mrb[0].mxu0
    %v325 = vpop.f32.mrb[0].mxu0
    %v326 = vpop.f32.mrb[0].mxu0
    %327 = vdwg.mxu0
    %v328 = vxor.u32 %v323, 2147483648
    %v329 = vmul.f32 %v328, 1.442695
    %v330 = vpow.pop %v329
    %v331 = vadd.f32 %v330, 1.0
    %v332 = vrcp.pop %v331
    %v333 = vmul.f32 1.0, %v332
    %334 = vst [vmem:[#allocation2] sm:$0x1] %v333
    // Predicated region
    $region22: #{tpu_custom_call.1} parent=1 // pred_check
      _
    $region23: #{tpu_custom_call.1} parent=1 // pred_check_branch
      %336 = sbr.rel (0) target = $region25
    $region24: #{tpu_custom_call.1} parent=1 // pred_region
      %s338 = ssub.s32 16, 16
      %339 = vsyncadd [#allocation3], %s338
      %s341 = sshll.u32 [#allocation2], 4
      %s342 = int_to_ptr.vmem [resolvable:$true] %s341
      %344 = dma.vmem_to_hbm [thread:$0]  %s342, 16, %s5, [#allocation3]
    $region25: #{tpu_custom_call.1} parent=1 // pred_fallthru
      _
    // Predicated region
    $region26: #{tpu_custom_call.1} parent=1 // pred_check
      _
    $region27: #{tpu_custom_call.1} parent=1 // pred_check_branch
      %346 = sbr.rel (0) target = $region29
    $region28: #{tpu_custom_call.1} parent=1 // pred_region
      %347 = dma.done [#allocation3], 16
    $region29: #{tpu_custom_call.1} parent=1 // pred_fallthru
      _
    %348 = vsyncpa [#allocation3], 1

</llo_original>
